<compile_context>
chip_gen: v7x
topology: tpu7x:2x2x1
jax: 0.10.0
libtpu: 0.0.40
codegen_flags: <defaults>
</compile_context>

<pallas_src>
import functools

import jax
import jax.numpy as jnp
from jax.experimental import pallas as pl
from jax.experimental.pallas import tpu as pltpu


def _round_up(a, b):
    return (a + b - 1) // b * b


def _make_mlp_kernel(num_weights):
    """Builds a kernel computing the full MLP chain for `num_weights` layers."""

    def kernel(*refs):
        x_ref = refs[0]
        w_refs = refs[1:1 + num_weights]
        o_ref = refs[1 + num_weights]

        # x arrives as f32; cast to bf16 on the VPU (hidden under the DMA) so
        # the MXU gets bf16 operands without a separate wrapper cast pass.
        h = x_ref[...].astype(jnp.bfloat16)
        for li, w_ref in enumerate(w_refs):
            # Linear (bias=False): h @ W, bf16 operands, f32 accumulation (MXU).
            h = jnp.dot(h, w_ref[...], preferred_element_type=jnp.float32)
            if li != num_weights - 1:
                # ReLU on hidden layers, kept in f32 (v5e VPU has no bf16 ALUs),
                # then cast to bf16 only as the next MXU operand.
                h = jnp.maximum(h, 0.0)
                h = h.astype(jnp.bfloat16)
        # Final layer has activation=None; h is already f32 from the last dot.
        o_ref[...] = h.astype(o_ref.dtype)

    return kernel


@functools.partial(jax.jit, static_argnames=("block_batch",))
def mlpnet_forward(x, weights, *, block_batch=1024):
    """Pallas forward pass of MLPnet (default config: bias-free Linear + ReLU).

    Args:
      x:           (batch, n_features) float32
      weights:     tuple of (in_dim, out_dim) float32 matrices, one per layer.
      block_batch: max rows per batch tile (rounded to a multiple of 8).
    Returns:
      (batch, n_output) float32
    """
    weights = tuple(weights)
    num_w = len(weights)
    batch, n_features = x.shape
    n_output = weights[-1].shape[1]

    # bf16 weights → halved DMA / full-rate MXU; they are tiny and VMEM-resident.
    ws = [w.astype(jnp.bfloat16) for w in weights]

    # --- batch tiling: multiple of 8 sublanes; cap so the grid keeps ~4 steps
    # (keeps both v7x TensorCores busy and DMA double-buffered), pad batch to a
    # whole number of tiles. Padded rows stay zero through bias-free Linear+ReLU.
    tb = min(int(block_batch), _round_up(pl.cdiv(batch, 4), 8))
    tb = max(8, _round_up(tb, 8))
    batch_pad = _round_up(batch, tb)
    x_p = x if batch_pad == batch else jnp.pad(x, ((0, batch_pad - batch), (0, 0)))

    grid = (batch_pad // tb,)
    kernel = _make_mlp_kernel(num_w)

    # Input: f32 activation tile; full feature dim (== full array dim, legal).
    in_specs = [pl.BlockSpec((tb, n_features), lambda i: (i, 0))]
    # Weights: full-array blocks, constant index_map → VMEM-resident across steps.
    in_specs += [pl.BlockSpec(w.shape, lambda i: (0, 0)) for w in ws]
    # Output: full n_output last dim (== full array dim) → no lane padding,
    # no readback slice over padded columns.
    out_spec = pl.BlockSpec((tb, n_output), lambda i: (i, 0))

    flops = 2 * batch_pad * sum(w.shape[0] * w.shape[1] for w in weights)
    bytes_accessed = (batch_pad * n_features * 4                 # x (f32 in)
                      + sum(w.shape[0] * w.shape[1] for w in weights) * 2  # bf16 weights
                      + batch_pad * n_output * 4)                # f32 out

    out = pl.pallas_call(
        kernel,
        out_shape=jax.ShapeDtypeStruct((batch_pad, n_output), jnp.float32),
        grid=grid,
        in_specs=in_specs,
        out_specs=out_spec,
        compiler_params=pltpu.CompilerParams(
            dimension_semantics=("parallel",)),
        cost_estimate=pl.CostEstimate(
            flops=flops, transcendentals=0, bytes_accessed=bytes_accessed),
    )(x_p, *ws)

    if batch_pad != batch:
        out = out[:batch]
    return out


def init_mlpnet_params(key, n_features, n_hidden, n_output):
    """Deterministic init matching PyTorch nn.Linear default:
    U(-1/sqrt(fan_in), 1/sqrt(fan_in)). Weights returned as (in, out)."""
    dims = [n_features] + list(n_hidden) + [n_output]
    weights = []
    for i in range(len(dims) - 1):
        key, sub = jax.random.split(key)
        fan_in, fan_out = dims[i], dims[i + 1]
        bound = 1.0 / jnp.sqrt(jnp.float32(fan_in))
        w = jax.random.uniform(sub, (fan_in, fan_out),
                               dtype=jnp.float32,
                               minval=-bound, maxval=bound)
        weights.append(w)
    return tuple(weights)


def reference_forward_bf16(x, weights):
    """Plain-JAX reference matching the kernel's dtype policy
    (bf16 MXU operands, f32 accumulation & elementwise)."""
    h = x.astype(jnp.bfloat16)
    for li, w in enumerate(weights):
        h = jnp.dot(h, w.astype(jnp.bfloat16),
                    preferred_element_type=jnp.float32)
        if li != len(weights) - 1:
            h = jnp.maximum(h, 0.0).astype(jnp.bfloat16)
    return h


def reference_forward_f32(x, weights):
    """Pure f32 reference (matches the PyTorch model's arithmetic)."""
    h = x
    for li, w in enumerate(weights):
        h = jnp.dot(h, w, preferred_element_type=jnp.float32)
        if li != len(weights) - 1:
            h = jnp.maximum(h, 0.0)
    return h


if __name__ == "__main__":
    # Module-consistent (small) config:
    #   MLPnet(n_features=32, n_hidden=[64, 32], n_output=16,
    #          activation='ReLU', bias=False)
    n_features = 32
    n_hidden = [64, 32]
    n_output = 16

    key = jax.random.PRNGKey(0)
    key, wkey = jax.random.split(key)
    weights = init_mlpnet_params(wkey, n_features, n_hidden, n_output)

    # Main check: batch large enough for a multi-step (pipelined, parallel) grid.
    batch = 64
    key, xkey = jax.random.split(key)
    x = jax.random.normal(xkey, (batch, n_features), dtype=jnp.float32)

    out = mlpnet_forward(x, weights)
    out = jax.block_until_ready(out)
    assert out.shape == (batch, n_output), out.shape

    ref_bf16 = reference_forward_bf16(x, weights)
    assert jnp.allclose(out, ref_bf16, atol=2e-3, rtol=2e-3), \
        "mismatch vs bf16-matched reference"
    ref_f32 = reference_forward_f32(x, weights)
    assert jnp.allclose(out, ref_f32, atol=5e-2, rtol=5e-2), \
        "mismatch vs f32 reference"

    # Secondary check: odd batch size exercises the padding / slicing path.
    batch2 = 13
    key, xkey2 = jax.random.split(key)
    x2 = jax.random.normal(xkey2, (batch2, n_features), dtype=jnp.float32)
    out2 = jax.block_until_ready(mlpnet_forward(x2, weights))
    assert out2.shape == (batch2, n_output), out2.shape
    ref2 = reference_forward_bf16(x2, weights)
    assert jnp.allclose(out2, ref2, atol=2e-3, rtol=2e-3), "mismatch (odd batch)"

    print("KERNEL_OK")
</pallas_src>

<mosaic_0001>
module attributes {stable_mosaic.version = 11 : i64} {
  func.func @kernel(%arg0: i32, %arg1: memref<16x32xf32, #tpu.memory_space<vmem>>, %arg2: memref<32x64xbf16, #tpu.memory_space<vmem>>, %arg3: memref<64x32xbf16, #tpu.memory_space<vmem>>, %arg4: memref<32x16xbf16, #tpu.memory_space<vmem>>, %arg5: memref<16x16xf32, #tpu.memory_space<vmem>>) attributes {dimension_semantics = [#tpu.dimension_semantics<parallel>], iteration_bounds = array<i64: 4>, scalar_prefetch = 0 : i64, scratch_operands = 0 : i64, tpu.core_type = #tpu.core_type<tc>, window_params = [{transform_indices = @transform_0, window_bounds = array<i64: 16, 32>}, {pipeline_mode = #tpu.pipeline_mode<synchronous>, transform_indices = @transform_1, window_bounds = array<i64: 32, 64>}, {pipeline_mode = #tpu.pipeline_mode<synchronous>, transform_indices = @transform_2, window_bounds = array<i64: 64, 32>}, {pipeline_mode = #tpu.pipeline_mode<synchronous>, transform_indices = @transform_3, window_bounds = array<i64: 32, 16>}, {transform_indices = @transform_4, window_bounds = array<i64: 16, 16>}]} {
    %c0 = arith.constant 0 : index
    %c0_0 = arith.constant 0 : index
    %0 = vector.load %arg1[%c0, %c0_0] : memref<16x32xf32, #tpu.memory_space<vmem>>, vector<16x32xf32>
    %1 = arith.truncf %0 : vector<16x32xf32> to vector<16x32xbf16>
    %c0_1 = arith.constant 0 : index
    %c0_2 = arith.constant 0 : index
    %2 = vector.load %arg2[%c0_1, %c0_2] : memref<32x64xbf16, #tpu.memory_space<vmem>>, vector<32x64xbf16>
    %cst = arith.constant dense<0.000000e+00> : vector<16x64xf32>
    %3 = tpu.matmul %1, %2, %cst {dimension_numbers = #tpu.dot_dimension_numbers<[1], [0], [0], [1], [0, 0, 1, 1], [], []>} : vector<16x32xbf16>, vector<32x64xbf16>, vector<16x64xf32> -> vector<16x64xf32>
    %cst_3 = arith.constant 0.000000e+00 : f32
    %4 = vector.broadcast %cst_3 : f32 to vector<16x64xf32>
    %5 = arith.maximumf %3, %4 : vector<16x64xf32>
    %6 = arith.truncf %5 : vector<16x64xf32> to vector<16x64xbf16>
    %c0_4 = arith.constant 0 : index
    %c0_5 = arith.constant 0 : index
    %7 = vector.load %arg3[%c0_4, %c0_5] : memref<64x32xbf16, #tpu.memory_space<vmem>>, vector<64x32xbf16>
    %cst_6 = arith.constant dense<0.000000e+00> : vector<16x32xf32>
    %8 = tpu.matmul %6, %7, %cst_6 {dimension_numbers = #tpu.dot_dimension_numbers<[1], [0], [0], [1], [0, 0, 1, 1], [], []>} : vector<16x64xbf16>, vector<64x32xbf16>, vector<16x32xf32> -> vector<16x32xf32>
    %cst_7 = arith.constant 0.000000e+00 : f32
    %9 = vector.broadcast %cst_7 : f32 to vector<16x32xf32>
    %10 = arith.maximumf %8, %9 : vector<16x32xf32>
    %11 = arith.truncf %10 : vector<16x32xf32> to vector<16x32xbf16>
    %c0_8 = arith.constant 0 : index
    %c0_9 = arith.constant 0 : index
    %12 = vector.load %arg4[%c0_8, %c0_9] : memref<32x16xbf16, #tpu.memory_space<vmem>>, vector<32x16xbf16>
    %cst_10 = arith.constant dense<0.000000e+00> : vector<16x16xf32>
    %13 = tpu.matmul %11, %12, %cst_10 {dimension_numbers = #tpu.dot_dimension_numbers<[1], [0], [0], [1], [0, 0, 1, 1], [], []>} : vector<16x32xbf16>, vector<32x16xbf16>, vector<16x16xf32> -> vector<16x16xf32>
    %c0_11 = arith.constant 0 : index
    %c0_12 = arith.constant 0 : index
    %14 = vector.load %arg5[%c0_11, %c0_12] : memref<16x16xf32, #tpu.memory_space<vmem>>, vector<16x16xf32>
    tpu.vector_store %arg5[%c0_11, %c0_12], %13 {strides = array<i32>} : memref<16x16xf32, #tpu.memory_space<vmem>>, vector<16x16xf32>,
    return
  }
  func.func @transform_0(%arg0: i32) -> (i32, i32) {
    %c0_i32 = arith.constant 0 : i32
    %c0_i32_0 = arith.constant 0 : i32
    return %arg0, %c0_i32 : i32, i32
  }
  func.func @transform_1(%arg0: i32) -> (i32, i32) {
    %c0_i32 = arith.constant 0 : i32
    %c0_i32_0 = arith.constant 0 : i32
    %c0_i32_1 = arith.constant 0 : i32
    return %c0_i32, %c0_i32_0 : i32, i32
  }
  func.func @transform_2(%arg0: i32) -> (i32, i32) {
    %c0_i32 = arith.constant 0 : i32
    %c0_i32_0 = arith.constant 0 : i32
    %c0_i32_1 = arith.constant 0 : i32
    return %c0_i32, %c0_i32_0 : i32, i32
  }
  func.func @transform_3(%arg0: i32) -> (i32, i32) {
    %c0_i32 = arith.constant 0 : i32
    %c0_i32_0 = arith.constant 0 : i32
    %c0_i32_1 = arith.constant 0 : i32
    return %c0_i32, %c0_i32_0 : i32, i32
  }
  func.func @transform_4(%arg0: i32) -> (i32, i32) {
    %c0_i32 = arith.constant 0 : i32
    %c0_i32_0 = arith.constant 0 : i32
    return %arg0, %c0_i32 : i32, i32
  }
}

</mosaic_0001>

<llo_original>
// kernel: mlpnet_forward.1
$region0: #{mlpnet_forward.1}
  #allocation0 [shape = 'u32[]', space=smem, size = 0x4, offset = 0x4, fixed_abs, tag = 'smem constant byte address 0x4 - core index']
  #allocation1 [shape = 'u32[144,128]{1,0:T(1,128)}', space=vmem, size = 0x12000, scoped, tag = 'internal scratch']
  %s0 = inlined_call_operand.vmem [shape: f32[64,32], index: 0, kind: input, shape index: {}]
  %s1 = inlined_call_operand.vmem [shape: bf16[32,64], index: 1, kind: input, shape index: {}]
  %s2 = inlined_call_operand.vmem [shape: bf16[64,32], index: 2, kind: input, shape index: {}]
  %s3 = inlined_call_operand.vmem [shape: bf16[32,16], index: 3, kind: input, shape index: {}]
  %s4 = inlined_call_operand.vmem [shape: f32[64,16], index: 4, kind: output, shape index: {}]
  %s5 = sld [smem:[#allocation0]]
  $region49: #{mlpnet_forward.1} parent=0
    _
  %s7 = ssub.s32 1, %s5
  %s8 = scalar_select 0, %s7, %s5
  loop: start=0, step=1, limit=6
  $region2: #{mlpnet_forward.1} parent=0 // loop_pre_header
    _
  $region3: #{mlpnet_forward.1} parent=0 // loop_header
    %s10 = sphi 0, %s14
    %p11 = scmp.ge.s32.totalorder %s10, 6
    %s20 = sphi 0, %s22
    %s23 = sphi 0, %s20
    %s24 = sphi 0, %s23
    %s40 = sphi 0, %s24
    %s44 = sphi 0, %s44
    %s46 = sphi 0, %s44
    %s47 = sphi 0, %s46
    %s61 = sphi 0, %s47
    %s65 = sphi 0, %s65
    %s67 = sphi 0, %s65
    %s68 = sphi 0, %s67
    %s82 = sphi 0, %s68
    %s86 = sphi 0, %s86
    %s88 = sphi 0, %s86
    %s89 = sphi 0, %s88
    %s103 = sphi 0, %s89
    %s109 = sphi 0, %s111
    %s112 = sphi 0, %s109
    %s113 = sphi 0, %s112
    %s129 = sphi 0, %s113
  $region4: #{mlpnet_forward.1} parent=0 // loop_header_branch
    %13 = sbr.rel (%p11) target = $region8
  $region5: #{mlpnet_forward.1} parent=0 // loop_body
    %s15 = ssub.s32 %s10, 1
    %s16 = ssub.s32 %s10, 2
    %s17 = sadd.s32 %s10, 1
    %s18 = ssub.s32 %s10, %s17
    %p19 = scmp.eq.s32.totalorder %s18, 0
    %s21 = sadd.s32 %s20, 1
    %s22 = scalar_select %p19, %s20, %s21
    %p25 = pneg %p19
    %p26 = scmp.eq.s32.totalorder %s10, 3
    %p27 = por %p25, %p26
    %p28 = scmp.ne.s32.totalorder %s20, %s23
    %p29 = scmp.eq.s32.totalorder %s10, 0
    %p30 = por %p28, %p29
    %p31 = scmp.ne.s32.totalorder %s20, %s23
    %p32 = scmp.eq.s32.totalorder %s15, 3
    %p33 = por %p31, %p32
    %p34 = scmp.ne.s32.totalorder %s23, %s24
    %p35 = scmp.eq.s32.totalorder %s15, 0
    %p36 = por %p34, %p35
    %p37 = scmp.ne.s32.totalorder %s23, %s24
    %p38 = scmp.eq.s32.totalorder %s16, 3
    %p39 = por %p37, %p38
    %p41 = scmp.ne.s32.totalorder %s24, %s40
    %p42 = scmp.eq.s32.totalorder %s16, 0
    %p43 = por %p41, %p42
    %s45 = sadd.s32 %s44, 1
    %p48 = scmp.eq.s32.totalorder %s10, 3
    %p49 = scmp.ne.s32.totalorder %s44, %s46
    %p50 = scmp.eq.s32.totalorder %s10, 0
    %p51 = por %p49, %p50
    %p52 = scmp.ne.s32.totalorder %s44, %s46
    %p53 = scmp.eq.s32.totalorder %s15, 3
    %p54 = por %p52, %p53
    %p55 = scmp.ne.s32.totalorder %s46, %s47
    %p56 = scmp.eq.s32.totalorder %s15, 0
    %p57 = por %p55, %p56
    %p58 = scmp.ne.s32.totalorder %s46, %s47
    %p59 = scmp.eq.s32.totalorder %s16, 3
    %p60 = por %p58, %p59
    %p62 = scmp.ne.s32.totalorder %s47, %s61
    %p63 = scmp.eq.s32.totalorder %s16, 0
    %p64 = por %p62, %p63
    %s66 = sadd.s32 %s65, 1
    %p69 = scmp.eq.s32.totalorder %s10, 3
    %p70 = scmp.ne.s32.totalorder %s65, %s67
    %p71 = scmp.eq.s32.totalorder %s10, 0
    %p72 = por %p70, %p71
    %p73 = scmp.ne.s32.totalorder %s65, %s67
    %p74 = scmp.eq.s32.totalorder %s15, 3
    %p75 = por %p73, %p74
    %p76 = scmp.ne.s32.totalorder %s67, %s68
    %p77 = scmp.eq.s32.totalorder %s15, 0
    %p78 = por %p76, %p77
    %p79 = scmp.ne.s32.totalorder %s67, %s68
    %p80 = scmp.eq.s32.totalorder %s16, 3
    %p81 = por %p79, %p80
    %p83 = scmp.ne.s32.totalorder %s68, %s82
    %p84 = scmp.eq.s32.totalorder %s16, 0
    %p85 = por %p83, %p84
    %s87 = sadd.s32 %s86, 1
    %p90 = scmp.eq.s32.totalorder %s10, 3
    %p91 = scmp.ne.s32.totalorder %s86, %s88
    %p92 = scmp.eq.s32.totalorder %s10, 0
    %p93 = por %p91, %p92
    %p94 = scmp.ne.s32.totalorder %s86, %s88
    %p95 = scmp.eq.s32.totalorder %s15, 3
    %p96 = por %p94, %p95
    %p97 = scmp.ne.s32.totalorder %s88, %s89
    %p98 = scmp.eq.s32.totalorder %s15, 0
    %p99 = por %p97, %p98
    %p100 = scmp.ne.s32.totalorder %s88, %s89
    %p101 = scmp.eq.s32.totalorder %s16, 3
    %p102 = por %p100, %p101
    %p104 = scmp.ne.s32.totalorder %s89, %s103
    %p105 = scmp.eq.s32.totalorder %s16, 0
    %p106 = por %p104, %p105
    %s107 = ssub.s32 %s10, %s17
    %p108 = scmp.eq.s32.totalorder %s107, 0
    %s110 = sadd.s32 %s109, 1
    %s111 = scalar_select %p108, %s109, %s110
    %p114 = pneg %p108
    %p115 = scmp.eq.s32.totalorder %s10, 3
    %p116 = por %p114, %p115
    %p117 = scmp.ne.s32.totalorder %s109, %s112
    %p118 = scmp.eq.s32.totalorder %s10, 0
    %p119 = por %p117, %p118
    %p120 = scmp.ne.s32.totalorder %s109, %s112
    %p121 = scmp.eq.s32.totalorder %s15, 3
    %p122 = por %p120, %p121
    %p123 = scmp.ne.s32.totalorder %s112, %s113
    %p124 = scmp.eq.s32.totalorder %s15, 0
    %p125 = por %p123, %p124
    %p126 = scmp.ne.s32.totalorder %s112, %s113
    %p127 = scmp.eq.s32.totalorder %s16, 3
    %p128 = por %p126, %p127
    %p130 = scmp.ne.s32.totalorder %s113, %s129
    %p131 = scmp.eq.s32.totalorder %s16, 0
    %p132 = por %p130, %p131
    %p133 = scmp.le.s32.totalorder 1, %s10
    %p134 = scmp.lt.s32.totalorder %s10, 5
    %p135 = pnand %p133, %p134
    %p136 = pneg %p135
    // Predicated region
    $region9: #{mlpnet_forward.1} parent=5 // pred_check
      _
    $region10: #{mlpnet_forward.1} parent=5 // pred_check_branch
      %138 = sbr.rel (%p135) target = $region12
    $region11: #{mlpnet_forward.1} parent=5 // pred_region
      %s139 = ssub.s32 %s10, 1
      // Predicated region
      $region13: #{mlpnet_forward.1} parent=11 // pred_check
        %p140 = pneg %p57
      $region14: #{mlpnet_forward.1} parent=11 // pred_check_branch
        %142 = sbr.rel (%p140) target = $region16
      $region15: #{mlpnet_forward.1} parent=11 // pred_region
        _
      $region16: #{mlpnet_forward.1} parent=11 // pred_fallthru
        _
      // Predicated region
      $region17: #{mlpnet_forward.1} parent=11 // pred_check
        %p143 = pneg %p78
      $region18: #{mlpnet_forward.1} parent=11 // pred_check_branch
        %145 = sbr.rel (%p143) target = $region20
      $region19: #{mlpnet_forward.1} parent=11 // pred_region
        _
      $region20: #{mlpnet_forward.1} parent=11 // pred_fallthru
        _
      // Predicated region
      $region21: #{mlpnet_forward.1} parent=11 // pred_check
        %p146 = pneg %p99
      $region22: #{mlpnet_forward.1} parent=11 // pred_check_branch
        %148 = sbr.rel (%p146) target = $region24
      $region23: #{mlpnet_forward.1} parent=11 // pred_region
        _
      $region24: #{mlpnet_forward.1} parent=11 // pred_fallthru
        _
    $region12: #{mlpnet_forward.1} parent=5 // pred_fallthru
      _
    %p149 = scmp.lt.s32.totalorder %s10, 4
    // Predicated region
    $region25: #{mlpnet_forward.1} parent=5 // pred_check
      %p150 = pneg %p149
    $region26: #{mlpnet_forward.1} parent=5 // pred_check_branch
      %152 = sbr.rel (%p150) target = $region28
    $region27: #{mlpnet_forward.1} parent=5 // pred_region
      // Predicated region
      $region29: #{mlpnet_forward.1} parent=27 // pred_check
        %p153 = pneg %p30
      $region30: #{mlpnet_forward.1} parent=27 // pred_check_branch
        %155 = sbr.rel (%p153) target = $region32
      $region31: #{mlpnet_forward.1} parent=27 // pred_region
        %s156 = smul.u32 2, %s10
        %p157 = scmp.lt.s32.totalorder %s156, 7
        %s158 = scalar_select %p157, %s156, 7
        %s159 = smul.addr %s158, 8
        %s160 = scalar_lea.vmem %s0, %s159
        %s161 = smul.u32 2, %s10
      $region32: #{mlpnet_forward.1} parent=27 // pred_fallthru
        _
    $region28: #{mlpnet_forward.1} parent=5 // pred_fallthru
      _
    %p162 = scmp.le.s32.totalorder 1, %s10
    %p163 = scmp.lt.s32.totalorder %s10, 5
    %p164 = pnand %p162, %p163
    %p165 = pneg %p164
    // Predicated region
    $region33: #{mlpnet_forward.1} parent=5 // pred_check
      _
    $region34: #{mlpnet_forward.1} parent=5 // pred_check_branch
      %167 = sbr.rel (%p164) target = $region36
    $region35: #{mlpnet_forward.1} parent=5 // pred_region
      %s168 = ssub.s32 %s10, 1
      %s169 = smul.u32 2, %s15
      %p170 = scmp.lt.s32.totalorder %s169, 7
      %s171 = scalar_select %p170, %s169, 7
      %s172 = smul.addr %s171, 8
      %s173 = scalar_lea.vmem %s0, %s172
      %p174 = pneg %p36
      %p175 = pneg %p33
      %p176 = pneg %p57
      %p177 = pneg %p54
      %p178 = pneg %p78
      %p179 = pneg %p75
      %p180 = pneg %p99
      %p181 = pneg %p96
      %p182 = pneg %p125
      %p183 = pneg %p122
      %s184 = smul.u32 2, %s15
      %p185 = scmp.lt.s32.totalorder %s184, 7
      %s186 = scalar_select %p185, %s184, 7
      %s187 = smul.addr %s186, 8
      %s188 = scalar_lea.vmem %s4, %s187
      %s189 = smul.u32 2, %s15
      %p190 = scmp.lt.s32.totalorder %s189, 7
      %s191 = scalar_select %p190, %s189, 7
      %s192 = smul.addr %s191, 8
      %s193 = scalar_lea.vmem %s0, %s192
      %s194 = smul.u32 2, %s15
      %s195 = smul.u32 2, %s15
      %p196 = scmp.lt.s32.totalorder %s195, 7
      %s197 = scalar_select %p196, %s195, 7
      %s198 = smul.addr %s197, 8
      %s199 = scalar_lea.vmem %s4, %s198
      %s200 = smul.u32 2, %s15
      %v202 = vld [vmem:[%s193] sm:$0xff]
      %v203 = vld [vmem:[%s193 + $0x8] sm:$0xff]
      %v204 = vpack.c.bf16 %v203, %v202
      %v205 = vld [vmem:[%s1] sm:$0xf]
      %v206 = vld [vmem:[%s1 + $0x4] sm:$0xf]
      %v207 = vld [vmem:[%s1 + $0x8] sm:$0xf]
      %v208 = vld [vmem:[%s1 + $0xc] sm:$0xf]
      %v213 = vunpack.c.l.b16 %v205
      %v214 = vunpack.c.l.b16 %v206
      %v215 = vunpack.c.l.b16 %v207
      %v216 = vunpack.c.l.b16 %v208
      %v217 = vpack.c.b16 %v214, %v213
      %v218 = vpack.c.b16 %v216, %v215
      %vm221 = vcmask 261120
      %v223 = vsel %vm221, %v204, 0
      %225 = vmatprep.subr.bf16.mxu0 0
      %226 = vmatpush1.bf16.msra.mxu0 %v217
      %227 = vmatprep.subr.bf16.mxu0 0
      %228 = vmatpush1.bf16.msra.mxu0 %v218
      %229 = vmatprep.subr.bf16.mxu0 0
      %230 = vmatpush1.bf16.msra.mxu0 0
      %231 = vmatprep.subr.bf16.mxu0 0
      %232 = vmatpush1.bf16.msra.mxu0 0
      %233 = vmatprep.subr.bf16.mxu0 0
      %234 = vmatpush1.bf16.msra.mxu0 0
      %235 = vmatprep.subr.bf16.mxu0 0
      %236 = vmatpush1.bf16.msra.mxu0 0
      %237 = vmatprep.subr.bf16.mxu0 0
      %238 = vmatpush1.bf16.msra.mxu0 0
      %239 = vmatprep.subr.bf16.mxu0 0
      %240 = vmatpush1.bf16.msra.mxu0 0
      %241 = vmatprep.subr.bf16.mxu0 0
      %242 = vmatpush1.bf16.msra.mxu0 0
      %243 = vmatprep.subr.bf16.mxu0 0
      %244 = vmatpush1.bf16.msra.mxu0 0
      %245 = vmatprep.subr.bf16.mxu0 0
      %246 = vmatpush1.bf16.msra.mxu0 0
      %247 = vmatprep.subr.bf16.mxu0 0
      %248 = vmatpush1.bf16.msra.mxu0 0
      %249 = vmatprep.subr.bf16.mxu0 0
      %250 = vmatpush1.bf16.msra.mxu0 0
      %251 = vmatprep.subr.bf16.mxu0 0
      %252 = vmatpush1.bf16.msra.mxu0 0
      %253 = vmatprep.subr.bf16.mxu0 0
      %254 = vmatpush1.bf16.msra.mxu0 0
      %255 = vmatprep.subr.bf16.mxu0 0
      %256 = vmatpush1.bf16.msra.mxu0 0
      %257 = vmatprep.mubr.bf16.mxu0 0
      %258 = vmatmul.mubr.bf16.gmra.mrb[0].mxu0 %v223
      %v259 = vpop.f32.mrb[0].mxu0
      %v260 = vadd.f32 0.0, %v259
      %v261 = vpop.f32.mrb[0].mxu0
      %v262 = vpop.f32.mrb[0].mxu0
      %v263 = vadd.f32 0.0, %v262
      %v264 = vpop.f32.mrb[0].mxu0
      %265 = vdwg.mxu0
      %v266 = vmax.f32 %v260, 0.0
      %v267 = vmax.f32 %v263, 0.0
      %v268 = vpack.c.bf16 %v267, %v266
      %v269 = vld [vmem:[%s2] sm:$0xf]
      %v270 = vld [vmem:[%s2 + $0x4] sm:$0xf]
      %v271 = vld [vmem:[%s2 + $0x8] sm:$0xf]
      %v272 = vld [vmem:[%s2 + $0xc] sm:$0xf]
      %v273 = vld [vmem:[%s2 + $0x10] sm:$0xf]
      %v274 = vld [vmem:[%s2 + $0x14] sm:$0xf]
      %v275 = vld [vmem:[%s2 + $0x18] sm:$0xf]
      %v276 = vld [vmem:[%s2 + $0x1c] sm:$0xf]
      %v285 = vunpack.c.l.b16 %v269
      %v286 = vunpack.c.l.b16 %v270
      %v287 = vunpack.c.l.b16 %v271
      %v288 = vunpack.c.l.b16 %v272
      %v289 = vunpack.c.l.b16 %v273
      %v290 = vunpack.c.l.b16 %v274
      %v291 = vunpack.c.l.b16 %v275
      %v292 = vunpack.c.l.b16 %v276
      %v293 = vpack.c.b16 %v286, %v285
      %v294 = vpack.c.b16 %v288, %v287
      %v295 = vpack.c.b16 %v290, %v289
      %v296 = vpack.c.b16 %v292, %v291
      %vm301 = vcmask 523264
      %v303 = vsel %vm301, %v268, 0
      %305 = vmatprep.subr.bf16.mxu0 0
      %306 = vmatpush1.bf16.msra.mxu0 %v293
      %307 = vmatprep.subr.bf16.mxu0 0
      %308 = vmatpush1.bf16.msra.mxu0 %v294
      %309 = vmatprep.subr.bf16.mxu0 0
      %310 = vmatpush1.bf16.msra.mxu0 %v295
      %311 = vmatprep.subr.bf16.mxu0 0
      %312 = vmatpush1.bf16.msra.mxu0 %v296
      %313 = vmatprep.subr.bf16.mxu0 0
      %314 = vmatpush1.bf16.msra.mxu0 0
      %315 = vmatprep.subr.bf16.mxu0 0
      %316 = vmatpush1.bf16.msra.mxu0 0
      %317 = vmatprep.subr.bf16.mxu0 0
      %318 = vmatpush1.bf16.msra.mxu0 0
      %319 = vmatprep.subr.bf16.mxu0 0
      %320 = vmatpush1.bf16.msra.mxu0 0
      %321 = vmatprep.subr.bf16.mxu0 0
      %322 = vmatpush1.bf16.msra.mxu0 0
      %323 = vmatprep.subr.bf16.mxu0 0
      %324 = vmatpush1.bf16.msra.mxu0 0
      %325 = vmatprep.subr.bf16.mxu0 0
      %326 = vmatpush1.bf16.msra.mxu0 0
      %327 = vmatprep.subr.bf16.mxu0 0
      %328 = vmatpush1.bf16.msra.mxu0 0
      %329 = vmatprep.subr.bf16.mxu0 0
      %330 = vmatpush1.bf16.msra.mxu0 0
      %331 = vmatprep.subr.bf16.mxu0 0
      %332 = vmatpush1.bf16.msra.mxu0 0
      %333 = vmatprep.subr.bf16.mxu0 0
      %334 = vmatpush1.bf16.msra.mxu0 0
      %335 = vmatprep.subr.bf16.mxu0 0
      %336 = vmatpush1.bf16.msra.mxu0 0
      %337 = vmatprep.mubr.bf16.mxu0 0
      %338 = vmatmul.mubr.bf16.gmra.mrb[0].mxu0 %v303
      %v339 = vpop.f32.mrb[0].mxu0
      %v340 = vadd.f32 0.0, %v339
      %v341 = vpop.f32.mrb[0].mxu0
      %v342 = vpop.f32.mrb[0].mxu0
      %v343 = vadd.f32 0.0, %v342
      %v344 = vpop.f32.mrb[0].mxu0
      %345 = vdwg.mxu0
      %v346 = vmax.f32 %v340, 0.0
      %v347 = vmax.f32 %v343, 0.0
      %v348 = vpack.c.bf16 %v347, %v346
      %v349 = vld [vmem:[%s3] sm:$0xf]
      %v350 = vld [vmem:[%s3 + $0x4] sm:$0xf]
      %v351 = vld [vmem:[%s3 + $0x8] sm:$0xf]
      %v352 = vld [vmem:[%s3 + $0xc] sm:$0xf]
      %v357 = vunpack.c.l.b16 %v349
      %v358 = vunpack.c.l.b16 %v350
      %v359 = vunpack.c.l.b16 %v351
      %v360 = vunpack.c.l.b16 %v352
      %v361 = vpack.c.b16 %v358, %v357
      %v362 = vpack.c.b16 %v360, %v359
      %v366 = vsel %vm221, %v348, 0
      %368 = vmatprep.subr.bf16.mxu0 0
      %369 = vmatpush1.bf16.msra.mxu0 %v361
      %370 = vmatprep.subr.bf16.mxu0 0
      %371 = vmatpush1.bf16.msra.mxu0 %v362
      %372 = vmatprep.subr.bf16.mxu0 0
      %373 = vmatpush1.bf16.msra.mxu0 0
      %374 = vmatprep.subr.bf16.mxu0 0
      %375 = vmatpush1.bf16.msra.mxu0 0
      %376 = vmatprep.subr.bf16.mxu0 0
      %377 = vmatpush1.bf16.msra.mxu0 0
      %378 = vmatprep.subr.bf16.mxu0 0
      %379 = vmatpush1.bf16.msra.mxu0 0
      %380 = vmatprep.subr.bf16.mxu0 0
      %381 = vmatpush1.bf16.msra.mxu0 0
      %382 = vmatprep.subr.bf16.mxu0 0
      %383 = vmatpush1.bf16.msra.mxu0 0
      %384 = vmatprep.subr.bf16.mxu0 0
      %385 = vmatpush1.bf16.msra.mxu0 0
      %386 = vmatprep.subr.bf16.mxu0 0
      %387 = vmatpush1.bf16.msra.mxu0 0
      %388 = vmatprep.subr.bf16.mxu0 0
      %389 = vmatpush1.bf16.msra.mxu0 0
      %390 = vmatprep.subr.bf16.mxu0 0
      %391 = vmatpush1.bf16.msra.mxu0 0
      %392 = vmatprep.subr.bf16.mxu0 0
      %393 = vmatpush1.bf16.msra.mxu0 0
      %394 = vmatprep.subr.bf16.mxu0 0
      %395 = vmatpush1.bf16.msra.mxu0 0
      %396 = vmatprep.subr.bf16.mxu0 0
      %397 = vmatpush1.bf16.msra.mxu0 0
      %398 = vmatprep.subr.bf16.mxu0 0
      %399 = vmatpush1.bf16.msra.mxu0 0
      %400 = vmatprep.mubr.bf16.mxu0 0
      %401 = vmatmul.mubr.bf16.gmra.mrb[0].mxu0 %v366
      %v402 = vpop.f32.mrb[0].mxu0
      %v403 = vadd.f32 0.0, %v402
      %v404 = vpop.f32.mrb[0].mxu0
      %v405 = vpop.f32.mrb[0].mxu0
      %v406 = vadd.f32 0.0, %v405
      %v407 = vpop.f32.mrb[0].mxu0
      %408 = vdwg.mxu0
      %vm409 = vcmask 130048
      %410 = vst.msk [vmem:[%s199] sm:$0xff] %vm409, %v403
      %411 = vst.msk [vmem:[%s199 + $0x8] sm:$0xff] %vm409, %v406
      %s412 = smul.u32 2, %s15
      %p413 = scmp.lt.s32.totalorder %s412, 7
      %s414 = scalar_select %p413, %s412, 7
      %s415 = smul.addr %s414, 8
      %s416 = scalar_lea.vmem %s4, %s415
      // Predicated region
      $region37: #{mlpnet_forward.1} parent=35 // pred_check
        %p417 = pneg %p122
      $region38: #{mlpnet_forward.1} parent=35 // pred_check_branch
        %419 = sbr.rel (%p417) target = $region40
      $region39: #{mlpnet_forward.1} parent=35 // pred_region
        %s420 = smul.u32 2, %s15
      $region40: #{mlpnet_forward.1} parent=35 // pred_fallthru
        _
    $region36: #{mlpnet_forward.1} parent=5 // pred_fallthru
      _
    %p421 = scmp.le.s32.totalorder 2, %s10
    // Predicated region
    $region41: #{mlpnet_forward.1} parent=5 // pred_check
      %p422 = pneg %p421
    $region42: #{mlpnet_forward.1} parent=5 // pred_check_branch
      %424 = sbr.rel (%p422) target = $region44
    $region43: #{mlpnet_forward.1} parent=5 // pred_region
      %s425 = ssub.s32 %s10, 2
      // Predicated region
      $region45: #{mlpnet_forward.1} parent=43 // pred_check
        %p426 = pneg %p128
      $region46: #{mlpnet_forward.1} parent=43 // pred_check_branch
        %428 = sbr.rel (%p426) target = $region48
      $region47: #{mlpnet_forward.1} parent=43 // pred_region
        %s429 = smul.u32 2, %s16
        %p430 = scmp.lt.s32.totalorder %s429, 7
        %s431 = scalar_select %p430, %s429, 7
        %s432 = smul.addr %s431, 8
        %s433 = scalar_lea.vmem %s4, %s432
      $region48: #{mlpnet_forward.1} parent=43 // pred_fallthru
        _
    $region44: #{mlpnet_forward.1} parent=5 // pred_fallthru
      _
  $region6: #{mlpnet_forward.1} parent=0 // loop_footer
    %s14 = sadd.s32 1, %s10
  $region7: #{mlpnet_forward.1} parent=0 // loop_footer_branch
    %9 = sbr.rel target = $region3
  $region8: #{mlpnet_forward.1} parent=0 // loop_exit
    _

</llo_original>
